<compile_context>
chip_gen: v5e
topology: v5e:2x2
jax: 0.10.0
libtpu: 0.0.40
codegen_flags: <defaults>
</compile_context>

<pallas_src>
import functools

import jax
import jax.numpy as jnp
from jax.experimental import pallas as pl
from jax.experimental.pallas import tpu as pltpu

IN_DIM, H1, H2, OUT_DIM = 166, 256, 128, 64


def encoder_kernel(x_ref, w1_ref, b1_ref, w2_ref, b2_ref, w3_ref, b3_ref, o_ref):
    # x tile arrives in f32 from HBM; cast once in VMEM for full-rate MXU.
    x = x_ref[...].astype(jnp.bfloat16)                              # (TM, 166)

    # Linear(166 -> 256) + ReLU   (Dropout is identity in eval mode)
    h1 = jnp.dot(x, w1_ref[...], preferred_element_type=jnp.float32) + b1_ref[...]
    h1 = jnp.maximum(h1, 0.0).astype(jnp.bfloat16)                   # (TM, 256)

    # Linear(256 -> 128) + ReLU
    h2 = jnp.dot(h1, w2_ref[...], preferred_element_type=jnp.float32) + b2_ref[...]
    h2 = jnp.maximum(h2, 0.0).astype(jnp.bfloat16)                   # (TM, 128)

    # Linear(128 -> 64) + ReLU
    h3 = jnp.dot(h2, w3_ref[...], preferred_element_type=jnp.float32) + b3_ref[...]
    o_ref[...] = jnp.maximum(h3, 0.0)                                # (TM, 64)


@functools.partial(jax.jit, static_argnames=("block_rows",))
def encoder_classic1(x, w1, b1, w2, b2, w3, b3, *, block_rows=512):
    """x: (1, N, 166) or (N, 166).  PyTorch Linear weights: w1 (256,166),
    w2 (128,256), w3 (64,128); biases (256,), (128,), (64,)."""
    if x.ndim == 3:
        x = x[0]                                                     # squeeze(0)
    n, in_dim = x.shape
    assert in_dim == IN_DIM

    # Pre-transpose weights once ((out,in) -> (in,out)) and cast to bf16; they
    # are tiny (~0.33 MiB total) and stay resident in VMEM across grid steps.
    w1_t = w1.T.astype(jnp.bfloat16)                                 # (166, 256)
    w2_t = w2.T.astype(jnp.bfloat16)                                 # (256, 128)
    w3_t = w3.T.astype(jnp.bfloat16)                                 # (128,  64)
    b1_r = b1.reshape(1, H1).astype(jnp.float32)
    b2_r = b2.reshape(1, H2).astype(jnp.float32)
    b3_r = b3.reshape(1, OUT_DIM).astype(jnp.float32)

    # Row-tile selection: big tiles (512 default, MXU-row aligned on all gens),
    # shrink only for small N.  No host-side padding: ragged last block is
    # handled by Pallas (OOB writes on the final block are masked).
    n8 = -(-n // 8) * 8                         # smallest multiple of 8 >= n
    tm = min(max(block_rows, 8), n8)
    tm = -(-tm // 8) * 8                        # keep sublane alignment
    grid = (pl.cdiv(n, tm),)                    # >= 2 steps automatically when
                                                # N is large (v7x 2-TC split)

    flops = 2 * n * (IN_DIM * H1 + H1 * H2 + H2 * OUT_DIM)
    bytes_accessed = (4 * n * IN_DIM + 4 * n * OUT_DIM
                      + 2 * (IN_DIM * H1 + H1 * H2 + H2 * OUT_DIM)
                      + 4 * (H1 + H2 + OUT_DIM))

    out = pl.pallas_call(
        encoder_kernel,
        out_shape=jax.ShapeDtypeStruct((n, OUT_DIM), jnp.float32),
        grid_spec=pltpu.PrefetchScalarGridSpec(
            num_scalar_prefetch=0,
            grid=grid,
            in_specs=[
                pl.BlockSpec((tm, IN_DIM), lambda i: (i, 0)),        # streamed x tile
                pl.BlockSpec((IN_DIM, H1), lambda i: (0, 0)),        # resident weights
                pl.BlockSpec((1, H1), lambda i: (0, 0)),
                pl.BlockSpec((H1, H2), lambda i: (0, 0)),
                pl.BlockSpec((1, H2), lambda i: (0, 0)),
                pl.BlockSpec((H2, OUT_DIM), lambda i: (0, 0)),
                pl.BlockSpec((1, OUT_DIM), lambda i: (0, 0)),
            ],
            out_specs=pl.BlockSpec((tm, OUT_DIM), lambda i: (i, 0)),
        ),
        compiler_params=pltpu.CompilerParams(
            dimension_semantics=("parallel",)),
        cost_estimate=pl.CostEstimate(
            flops=flops, transcendentals=0, bytes_accessed=bytes_accessed),
    )(x, w1_t, b1_r, w2_t, b2_r, w3_t, b3_r)

    return out


def reference_forward(x, w1, b1, w2, b2, w3, b3):
    """Pure-JAX f32 reference mirroring the PyTorch eval-mode forward."""
    if x.ndim == 3:
        x = x[0]
    h1 = jnp.maximum(x @ w1.T + b1, 0.0)
    h2 = jnp.maximum(h1 @ w2.T + b2, 0.0)
    return jnp.maximum(h2 @ w3.T + b3, 0.0)


if __name__ == "__main__":
    # Small shapes consistent with the module: batch of N=40 instances of
    # dim 166 (leading singleton mirrors the PyTorch x.squeeze(0)).
    N = 40
    key = jax.random.PRNGKey(0)
    kx, kw1, kb1, kw2, kb2, kw3, kb3 = jax.random.split(key, 7)

    x = jax.random.normal(kx, (1, N, IN_DIM), dtype=jnp.float32)
    # PyTorch Linear convention: weight (out, in), bias (out,).
    w1 = jax.random.normal(kw1, (H1, IN_DIM), dtype=jnp.float32) / jnp.sqrt(IN_DIM)
    b1 = jax.random.normal(kb1, (H1,), dtype=jnp.float32) * 0.01
    w2 = jax.random.normal(kw2, (H2, H1), dtype=jnp.float32) / jnp.sqrt(H1)
    b2 = jax.random.normal(kb2, (H2,), dtype=jnp.float32) * 0.01
    w3 = jax.random.normal(kw3, (OUT_DIM, H2), dtype=jnp.float32) / jnp.sqrt(H2)
    b3 = jax.random.normal(kb3, (OUT_DIM,), dtype=jnp.float32) * 0.01

    ref = reference_forward(x, w1, b1, w2, b2, w3, b3)

    # Path 1: default tile (single block covers all 40 rows).
    out_big = jax.block_until_ready(encoder_classic1(x, w1, b1, w2, b2, w3, b3))
    # Path 2: tiny tile -> 3 grid steps with a ragged final block (40 = 16+16+8),
    # exercising the pipeline and the masked OOB write on the last block.
    out_tiled = jax.block_until_ready(
        encoder_classic1(x, w1, b1, w2, b2, w3, b3, block_rows=16))

    assert out_big.shape == (N, OUT_DIM)
    assert out_tiled.shape == (N, OUT_DIM)
    # bf16 MXU inputs with f32 accumulation => relaxed tolerance vs f32 ref.
    assert jnp.allclose(out_big, ref, atol=5e-2, rtol=5e-2)
    assert jnp.allclose(out_tiled, ref, atol=5e-2, rtol=5e-2)
    assert jnp.allclose(out_big, out_tiled, atol=1e-6, rtol=1e-6)

    print("KERNEL_OK")
</pallas_src>

<mosaic_0001>
module attributes {stable_mosaic.version = 11 : i64} {
  func.func @encoder_kernel(%arg0: i32, %arg1: memref<40x166xf32, #tpu.memory_space<vmem>>, %arg2: memref<166x256xbf16, #tpu.memory_space<vmem>>, %arg3: memref<1x256xf32, #tpu.memory_space<vmem>>, %arg4: memref<256x128xbf16, #tpu.memory_space<vmem>>, %arg5: memref<1x128xf32, #tpu.memory_space<vmem>>, %arg6: memref<128x64xbf16, #tpu.memory_space<vmem>>, %arg7: memref<1x64xf32, #tpu.memory_space<vmem>>, %arg8: memref<40x64xf32, #tpu.memory_space<vmem>>) attributes {dimension_semantics = [#tpu.dimension_semantics<parallel>], iteration_bounds = array<i64: 1>, scalar_prefetch = 0 : i64, scratch_operands = 0 : i64, tpu.core_type = #tpu.core_type<tc>, window_params = [{transform_indices = @transform_0, window_bounds = array<i64: 40, 166>}, {pipeline_mode = #tpu.pipeline_mode<synchronous>, transform_indices = @transform_1, window_bounds = array<i64: 166, 256>}, {pipeline_mode = #tpu.pipeline_mode<synchronous>, transform_indices = @transform_2, window_bounds = array<i64: 1, 256>}, {pipeline_mode = #tpu.pipeline_mode<synchronous>, transform_indices = @transform_3, window_bounds = array<i64: 256, 128>}, {pipeline_mode = #tpu.pipeline_mode<synchronous>, transform_indices = @transform_4, window_bounds = array<i64: 1, 128>}, {pipeline_mode = #tpu.pipeline_mode<synchronous>, transform_indices = @transform_5, window_bounds = array<i64: 128, 64>}, {pipeline_mode = #tpu.pipeline_mode<synchronous>, transform_indices = @transform_6, window_bounds = array<i64: 1, 64>}, {transform_indices = @transform_7, window_bounds = array<i64: 40, 64>}]} {
    %c0 = arith.constant 0 : index
    %c0_0 = arith.constant 0 : index
    %0 = vector.load %arg1[%c0, %c0_0] : memref<40x166xf32, #tpu.memory_space<vmem>>, vector<40x166xf32>
    %1 = arith.truncf %0 : vector<40x166xf32> to vector<40x166xbf16>
    %c0_1 = arith.constant 0 : index
    %c0_2 = arith.constant 0 : index
    %2 = vector.load %arg2[%c0_1, %c0_2] : memref<166x256xbf16, #tpu.memory_space<vmem>>, vector<166x256xbf16>
    %cst = arith.constant dense<0.000000e+00> : vector<40x256xf32>
    %3 = tpu.matmul %1, %2, %cst {dimension_numbers = #tpu.dot_dimension_numbers<[1], [0], [0], [1], [0, 0, 1, 1], [], []>} : vector<40x166xbf16>, vector<166x256xbf16>, vector<40x256xf32> -> vector<40x256xf32>
    %c0_3 = arith.constant 0 : index
    %c0_4 = arith.constant 0 : index
    %4 = vector.load %arg3[%c0_3, %c0_4] : memref<1x256xf32, #tpu.memory_space<vmem>>, vector<1x256xf32>
    %5 = vector.broadcast %4 : vector<1x256xf32> to vector<40x256xf32>
    %6 = arith.addf %3, %5 : vector<40x256xf32>
    %cst_5 = arith.constant 0.000000e+00 : f32
    %7 = vector.broadcast %cst_5 : f32 to vector<40x256xf32>
    %8 = arith.maximumf %6, %7 : vector<40x256xf32>
    %9 = arith.truncf %8 : vector<40x256xf32> to vector<40x256xbf16>
    %c0_6 = arith.constant 0 : index
    %c0_7 = arith.constant 0 : index
    %10 = vector.load %arg4[%c0_6, %c0_7] : memref<256x128xbf16, #tpu.memory_space<vmem>>, vector<256x128xbf16>
    %cst_8 = arith.constant dense<0.000000e+00> : vector<40x128xf32>
    %11 = tpu.matmul %9, %10, %cst_8 {dimension_numbers = #tpu.dot_dimension_numbers<[1], [0], [0], [1], [0, 0, 1, 1], [], []>} : vector<40x256xbf16>, vector<256x128xbf16>, vector<40x128xf32> -> vector<40x128xf32>
    %c0_9 = arith.constant 0 : index
    %c0_10 = arith.constant 0 : index
    %12 = vector.load %arg5[%c0_9, %c0_10] : memref<1x128xf32, #tpu.memory_space<vmem>>, vector<1x128xf32>
    %13 = vector.broadcast %12 : vector<1x128xf32> to vector<40x128xf32>
    %14 = arith.addf %11, %13 : vector<40x128xf32>
    %cst_11 = arith.constant 0.000000e+00 : f32
    %15 = vector.broadcast %cst_11 : f32 to vector<40x128xf32>
    %16 = arith.maximumf %14, %15 : vector<40x128xf32>
    %17 = arith.truncf %16 : vector<40x128xf32> to vector<40x128xbf16>
    %c0_12 = arith.constant 0 : index
    %c0_13 = arith.constant 0 : index
    %18 = vector.load %arg6[%c0_12, %c0_13] : memref<128x64xbf16, #tpu.memory_space<vmem>>, vector<128x64xbf16>
    %cst_14 = arith.constant dense<0.000000e+00> : vector<40x64xf32>
    %19 = tpu.matmul %17, %18, %cst_14 {dimension_numbers = #tpu.dot_dimension_numbers<[1], [0], [0], [1], [0, 0, 1, 1], [], []>} : vector<40x128xbf16>, vector<128x64xbf16>, vector<40x64xf32> -> vector<40x64xf32>
    %c0_15 = arith.constant 0 : index
    %c0_16 = arith.constant 0 : index
    %20 = vector.load %arg7[%c0_15, %c0_16] : memref<1x64xf32, #tpu.memory_space<vmem>>, vector<1x64xf32>
    %21 = vector.broadcast %20 : vector<1x64xf32> to vector<40x64xf32>
    %22 = arith.addf %19, %21 : vector<40x64xf32>
    %cst_17 = arith.constant 0.000000e+00 : f32
    %23 = vector.broadcast %cst_17 : f32 to vector<40x64xf32>
    %24 = arith.maximumf %22, %23 : vector<40x64xf32>
    %c0_18 = arith.constant 0 : index
    %c0_19 = arith.constant 0 : index
    %25 = vector.load %arg8[%c0_18, %c0_19] : memref<40x64xf32, #tpu.memory_space<vmem>>, vector<40x64xf32>
    tpu.vector_store %arg8[%c0_18, %c0_19], %24 {strides = array<i32>} : memref<40x64xf32, #tpu.memory_space<vmem>>, vector<40x64xf32>,
    return
  }
  func.func @transform_0(%arg0: i32) -> (i32, i32) {
    %c0_i32 = arith.constant 0 : i32
    %c0_i32_0 = arith.constant 0 : i32
    return %arg0, %c0_i32 : i32, i32
  }
  func.func @transform_1(%arg0: i32) -> (i32, i32) {
    %c0_i32 = arith.constant 0 : i32
    %c0_i32_0 = arith.constant 0 : i32
    %c0_i32_1 = arith.constant 0 : i32
    return %c0_i32, %c0_i32_0 : i32, i32
  }
  func.func @transform_2(%arg0: i32) -> (i32, i32) {
    %c0_i32 = arith.constant 0 : i32
    %c0_i32_0 = arith.constant 0 : i32
    %c0_i32_1 = arith.constant 0 : i32
    return %c0_i32, %c0_i32_0 : i32, i32
  }
  func.func @transform_3(%arg0: i32) -> (i32, i32) {
    %c0_i32 = arith.constant 0 : i32
    %c0_i32_0 = arith.constant 0 : i32
    %c0_i32_1 = arith.constant 0 : i32
    return %c0_i32, %c0_i32_0 : i32, i32
  }
  func.func @transform_4(%arg0: i32) -> (i32, i32) {
    %c0_i32 = arith.constant 0 : i32
    %c0_i32_0 = arith.constant 0 : i32
    %c0_i32_1 = arith.constant 0 : i32
    return %c0_i32, %c0_i32_0 : i32, i32
  }
  func.func @transform_5(%arg0: i32) -> (i32, i32) {
    %c0_i32 = arith.constant 0 : i32
    %c0_i32_0 = arith.constant 0 : i32
    %c0_i32_1 = arith.constant 0 : i32
    return %c0_i32, %c0_i32_0 : i32, i32
  }
  func.func @transform_6(%arg0: i32) -> (i32, i32) {
    %c0_i32 = arith.constant 0 : i32
    %c0_i32_0 = arith.constant 0 : i32
    %c0_i32_1 = arith.constant 0 : i32
    return %c0_i32, %c0_i32_0 : i32, i32
  }
  func.func @transform_7(%arg0: i32) -> (i32, i32) {
    %c0_i32 = arith.constant 0 : i32
    %c0_i32_0 = arith.constant 0 : i32
    return %arg0, %c0_i32 : i32, i32
  }
}

</mosaic_0001>

<llo_original>
// kernel: encoder_classic1.1
$region0: #{encoder_classic1.1}
  #allocation0 [shape = 'u32[]', space=smem, size = 0x4, offset = 0x4, fixed_abs, tag = 'smem constant byte address 0x4 - core index']
  #allocation1 [shape = 'u32[72,128]{1,0:T(1,128)}', space=vmem, size = 0x9000, scoped, tag = 'internal scratch']
  %s0 = inlined_call_operand.vmem [shape: f32[40,166], index: 0, kind: input, shape index: {}]
  %s1 = inlined_call_operand.vmem [shape: bf16[166,256], index: 1, kind: input, shape index: {}]
  %s2 = inlined_call_operand.vmem [shape: f32[1,256], index: 2, kind: input, shape index: {}]
  %s3 = inlined_call_operand.vmem [shape: bf16[256,128], index: 3, kind: input, shape index: {}]
  %s4 = inlined_call_operand.vmem [shape: f32[1,128], index: 4, kind: input, shape index: {}]
  %s5 = inlined_call_operand.vmem [shape: bf16[128,64], index: 5, kind: input, shape index: {}]
  %s6 = inlined_call_operand.vmem [shape: f32[1,64], index: 6, kind: input, shape index: {}]
  %s7 = inlined_call_operand.hbm [shape: f32[40,64], index: 7, kind: output, shape index: {}]
  %s8 = sld [smem:[#allocation0]]
  $region38: #{encoder_classic1.1} parent=0
    _
  %s10 = ssub.s32 1, %s8
  %s11 = scalar_select 0, %s10, %s8
  $region1: #{encoder_classic1.1} parent=0
    #allocation2 [shape = 'u8[20480]{0}', space=vmem, size = 0x5000, scoped, tag = 'output window, operand 0, single buffered']
    #allocation3 [shape = 's32[1]{0}', space=sflag, size = 0x4, scoped, tag = 'scoped memory for encoder_classic1.1']
    %12 = vsyncpa [#allocation3], 0
    // Predicated region
    $region2: #{encoder_classic1.1} parent=1 // pred_check
      _
    $region3: #{encoder_classic1.1} parent=1 // pred_check_branch
      %14 = sbr.rel (0) target = $region5
    $region4: #{encoder_classic1.1} parent=1 // pred_region
      _
    $region5: #{encoder_classic1.1} parent=1 // pred_fallthru
      _
    // Predicated region
    $region6: #{encoder_classic1.1} parent=1 // pred_check
      _
    $region7: #{encoder_classic1.1} parent=1 // pred_check_branch
      %16 = sbr.rel (0) target = $region9
    $region8: #{encoder_classic1.1} parent=1 // pred_region
      _
    $region9: #{encoder_classic1.1} parent=1 // pred_fallthru
      _
    // Predicated region
    $region10: #{encoder_classic1.1} parent=1 // pred_check
      _
    $region11: #{encoder_classic1.1} parent=1 // pred_check_branch
      %18 = sbr.rel (0) target = $region13
    $region12: #{encoder_classic1.1} parent=1 // pred_region
      _
    $region13: #{encoder_classic1.1} parent=1 // pred_fallthru
      _
    // Predicated region
    $region14: #{encoder_classic1.1} parent=1 // pred_check
      _
    $region15: #{encoder_classic1.1} parent=1 // pred_check_branch
      %20 = sbr.rel (0) target = $region17
    $region16: #{encoder_classic1.1} parent=1 // pred_region
      _
    $region17: #{encoder_classic1.1} parent=1 // pred_fallthru
      _
    // Predicated region
    $region18: #{encoder_classic1.1} parent=1 // pred_check
      _
    $region19: #{encoder_classic1.1} parent=1 // pred_check_branch
      %22 = sbr.rel (0) target = $region21
    $region20: #{encoder_classic1.1} parent=1 // pred_region
      _
    $region21: #{encoder_classic1.1} parent=1 // pred_fallthru
      _
    // Predicated region
    $region22: #{encoder_classic1.1} parent=1 // pred_check
      _
    $region23: #{encoder_classic1.1} parent=1 // pred_check_branch
      %24 = sbr.rel (0) target = $region25
    $region24: #{encoder_classic1.1} parent=1 // pred_region
      _
    $region25: #{encoder_classic1.1} parent=1 // pred_fallthru
      _
    // Predicated region
    $region26: #{encoder_classic1.1} parent=1 // pred_check
      _
    $region27: #{encoder_classic1.1} parent=1 // pred_check_branch
      %26 = sbr.rel (0) target = $region29
    $region28: #{encoder_classic1.1} parent=1 // pred_region
      _
    $region29: #{encoder_classic1.1} parent=1 // pred_fallthru
      _
    %v28 = vld [vmem:[%s0] sm:$0xff]
    %v29 = vld [vmem:[%s0 + $0x8] sm:$0xff]
    %v30 = vld [vmem:[%s0 + $0x10] sm:$0xff]
    %v31 = vld [vmem:[%s0 + $0x18] sm:$0xff]
    %v32 = vld [vmem:[%s0 + $0x20] sm:$0xff]
    %v33 = vld [vmem:[%s0 + $0x28] sm:$0xff]
    %v34 = vld [vmem:[%s0 + $0x30] sm:$0xff]
    %v35 = vld [vmem:[%s0 + $0x38] sm:$0xff]
    %v36 = vld [vmem:[%s0 + $0x40] sm:$0xff]
    %v37 = vld [vmem:[%s0 + $0x48] sm:$0xff]
    %v38 = vpack.c.bf16 %v30, %v28
    %v39 = vpack.c.bf16 %v31, %v29
    %v40 = vpack.c.bf16 %v34, %v32
    %v41 = vpack.c.bf16 %v35, %v33
    %v42 = vpack.c.bf16 %v36, %v36
    %v43 = vpack.c.bf16 %v37, %v37
    %v44 = vld [vmem:[%s1] sm:$0xff]
    %v45 = vld [vmem:[%s1 + $0x8] sm:$0xff]
    %v46 = vld [vmem:[%s1 + $0x10] sm:$0xff]
    %v47 = vld [vmem:[%s1 + $0x18] sm:$0xff]
    %v48 = vld [vmem:[%s1 + $0x20] sm:$0xff]
    %v49 = vld [vmem:[%s1 + $0x28] sm:$0xff]
    %v50 = vld [vmem:[%s1 + $0x30] sm:$0xff]
    %v51 = vld [vmem:[%s1 + $0x38] sm:$0xff]
    %v52 = vld [vmem:[%s1 + $0x40] sm:$0xff]
    %v53 = vld [vmem:[%s1 + $0x48] sm:$0xff]
    %v54 = vld [vmem:[%s1 + $0x50] sm:$0xff]
    %v55 = vld [vmem:[%s1 + $0x58] sm:$0xff]
    %v56 = vld [vmem:[%s1 + $0x60] sm:$0xff]
    %v57 = vld [vmem:[%s1 + $0x68] sm:$0xff]
    %v58 = vld [vmem:[%s1 + $0x70] sm:$0xff]
    %v59 = vld [vmem:[%s1 + $0x78] sm:$0xff]
    %v60 = vld [vmem:[%s1 + $0x80] sm:$0xff]
    %v61 = vld [vmem:[%s1 + $0x88] sm:$0xff]
    %v62 = vld [vmem:[%s1 + $0x90] sm:$0xff]
    %v63 = vld [vmem:[%s1 + $0x98] sm:$0xff]
    %v64 = vld [vmem:[%s1 + $0xa0] sm:$0x77]
    %v65 = vld [vmem:[%s2] sm:$0x3]
    %v67 = vperm.slane %v65, 0
    %v68 = vperm.slane %v65, 1
    %v92 = vunpack.c.l.b16 %v44
    %v93 = vunpack.c.h.b16 %v44
    %v94 = vunpack.c.l.b16 %v45
    %v95 = vunpack.c.h.b16 %v45
    %v96 = vunpack.c.l.b16 %v46
    %v97 = vunpack.c.h.b16 %v46
    %v98 = vunpack.c.l.b16 %v47
    %v99 = vunpack.c.h.b16 %v47
    %v100 = vunpack.c.l.b16 %v48
    %v101 = vunpack.c.h.b16 %v48
    %v102 = vunpack.c.l.b16 %v49
    %v103 = vunpack.c.h.b16 %v49
    %v104 = vunpack.c.l.b16 %v50
    %v105 = vunpack.c.h.b16 %v50
    %v106 = vunpack.c.l.b16 %v51
    %v107 = vunpack.c.h.b16 %v51
    %v108 = vunpack.c.l.b16 %v52
    %v109 = vunpack.c.h.b16 %v52
    %v110 = vunpack.c.l.b16 %v53
    %v111 = vunpack.c.h.b16 %v53
    %v112 = vunpack.c.l.b16 %v54
    %v113 = vunpack.c.h.b16 %v54
    %v114 = vunpack.c.l.b16 %v55
    %v115 = vunpack.c.h.b16 %v55
    %v116 = vunpack.c.l.b16 %v56
    %v117 = vunpack.c.h.b16 %v56
    %v118 = vunpack.c.l.b16 %v57
    %v119 = vunpack.c.h.b16 %v57
    %v120 = vunpack.c.l.b16 %v58
    %v121 = vunpack.c.h.b16 %v58
    %v122 = vunpack.c.l.b16 %v59
    %v123 = vunpack.c.h.b16 %v59
    %v124 = vunpack.c.l.b16 %v60
    %v125 = vunpack.c.h.b16 %v60
    %v126 = vunpack.c.l.b16 %v61
    %v127 = vunpack.c.h.b16 %v61
    %v128 = vunpack.c.l.b16 %v62
    %v129 = vunpack.c.h.b16 %v62
    %v130 = vunpack.c.l.b16 %v63
    %v131 = vunpack.c.h.b16 %v63
    %v132 = vunpack.c.l.b16 %v64
    %v133 = vunpack.c.h.b16 %v64
    %v134 = vpack.c.b16 %v94, %v92
    %v135 = vpack.c.b16 %v95, %v93
    %v136 = vpack.c.b16 %v98, %v96
    %v137 = vpack.c.b16 %v99, %v97
    %v138 = vpack.c.b16 %v102, %v100
    %v139 = vpack.c.b16 %v103, %v101
    %v140 = vpack.c.b16 %v106, %v104
    %v141 = vpack.c.b16 %v107, %v105
    %v142 = vpack.c.b16 %v110, %v108
    %v143 = vpack.c.b16 %v111, %v109
    %v144 = vpack.c.b16 %v114, %v112
    %v145 = vpack.c.b16 %v115, %v113
    %v146 = vpack.c.b16 %v118, %v116
    %v147 = vpack.c.b16 %v119, %v117
    %v148 = vpack.c.b16 %v122, %v120
    %v149 = vpack.c.b16 %v123, %v121
    %v150 = vpack.c.b16 %v126, %v124
    %v151 = vpack.c.b16 %v127, %v125
    %v152 = vpack.c.b16 %v130, %v128
    %v153 = vpack.c.b16 %v131, %v129
    %v154 = vpack.c.b16 %v132, %v132
    %v155 = vpack.c.b16 %v133, %v133
    %vm176 = vcmask 310272
    %v178 = vsel %vm176, %v39, 0
    %v181 = vsel %vm176, %v41, 0
    %v184 = vsel %vm176, %v43, 0
    %vm186 = vcmask 1042432
    %v188 = vsel %vm186, %v154, 0
    %v191 = vsel %vm186, %v155, 0
    %193 = vmatpush.bf16.msra.mxu0 %v148
    %194 = vmatpush.bf16.msra.mxu0 %v146
    %195 = vmatpush.bf16.msra.mxu0 %v144
    %196 = vmatpush.bf16.msra.mxu0 %v142
    %197 = vmatpush.bf16.msra.mxu0 %v140
    %198 = vmatpush.bf16.msra.mxu0 %v138
    %199 = vmatpush.bf16.msra.mxu0 %v136
    %200 = vmatpush.bf16.msra.mxu0 %v134
    %201 = vmatmul.bf16.gmra.mxu0 %v38
    %v202 = vpop.f32.mrf.mxu0
    %v203 = vadd.f32 %v67, %v202
    %v204 = vpop.f32.mrf.mxu0
    %v205 = vadd.f32 %v67, %v204
    %206 = vmatmul.bf16.gmra.mxu0 %v40
    %v207 = vpop.f32.mrf.mxu0
    %v208 = vadd.f32 %v67, %v207
    %v209 = vpop.f32.mrf.mxu0
    %v210 = vadd.f32 %v67, %v209
    %211 = vmatmul.bf16.gmra.mxu0 %v42
    %v212 = vpop.f32.mrf.mxu0
    %v213 = vadd.f32 %v67, %v212
    %v214 = vpop.f32.mrf.mxu0
    %215 = vdwg.mxu0
    %216 = vmatpush.bf16.msra.mxu0 0
    %217 = vmatpush.bf16.msra.mxu0 0
    %218 = vmatpush.bf16.msra.mxu0 0
    %219 = vmatpush.bf16.msra.mxu0 0
    %220 = vmatpush.bf16.msra.mxu0 0
    %221 = vmatpush.bf16.msra.mxu0 %v188
    %222 = vmatpush.bf16.msra.mxu0 %v152
    %223 = vmatpush.bf16.msra.mxu0 %v150
    %224 = vmatmul.bf16.gmra.mxu0 %v178
    %v225 = vpop.f32.mrf.mxu0
    %v226 = vadd.f32 %v203, %v225
    %v227 = vpop.f32.mrf.mxu0
    %v228 = vadd.f32 %v205, %v227
    %229 = vmatmul.bf16.gmra.mxu0 %v181
    %v230 = vpop.f32.mrf.mxu0
    %v231 = vadd.f32 %v208, %v230
    %v232 = vpop.f32.mrf.mxu0
    %v233 = vadd.f32 %v210, %v232
    %234 = vmatmul.bf16.gmra.mxu0 %v184
    %v235 = vpop.f32.mrf.mxu0
    %v236 = vadd.f32 %v213, %v235
    %v237 = vpop.f32.mrf.mxu0
    %238 = vdwg.mxu0
    %239 = vmatpush.bf16.msra.mxu0 %v149
    %240 = vmatpush.bf16.msra.mxu0 %v147
    %241 = vmatpush.bf16.msra.mxu0 %v145
    %242 = vmatpush.bf16.msra.mxu0 %v143
    %243 = vmatpush.bf16.msra.mxu0 %v141
    %244 = vmatpush.bf16.msra.mxu0 %v139
    %245 = vmatpush.bf16.msra.mxu0 %v137
    %246 = vmatpush.bf16.msra.mxu0 %v135
    %247 = vmatmul.bf16.gmra.mxu0 %v38
    %v248 = vpop.f32.mrf.mxu0
    %v249 = vadd.f32 %v68, %v248
    %v250 = vpop.f32.mrf.mxu0
    %v251 = vadd.f32 %v68, %v250
    %252 = vmatmul.bf16.gmra.mxu0 %v40
    %v253 = vpop.f32.mrf.mxu0
    %v254 = vadd.f32 %v68, %v253
    %v255 = vpop.f32.mrf.mxu0
    %v256 = vadd.f32 %v68, %v255
    %257 = vmatmul.bf16.gmra.mxu0 %v42
    %v258 = vpop.f32.mrf.mxu0
    %v259 = vadd.f32 %v68, %v258
    %v260 = vpop.f32.mrf.mxu0
    %261 = vdwg.mxu0
    %262 = vmatpush.bf16.msra.mxu0 0
    %263 = vmatpush.bf16.msra.mxu0 0
    %264 = vmatpush.bf16.msra.mxu0 0
    %265 = vmatpush.bf16.msra.mxu0 0
    %266 = vmatpush.bf16.msra.mxu0 0
    %267 = vmatpush.bf16.msra.mxu0 %v191
    %268 = vmatpush.bf16.msra.mxu0 %v153
    %269 = vmatpush.bf16.msra.mxu0 %v151
    %270 = vmatmul.bf16.gmra.mxu0 %v178
    %v271 = vpop.f32.mrf.mxu0
    %v272 = vadd.f32 %v249, %v271
    %v273 = vpop.f32.mrf.mxu0
    %v274 = vadd.f32 %v251, %v273
    %275 = vmatmul.bf16.gmra.mxu0 %v181
    %v276 = vpop.f32.mrf.mxu0
    %v277 = vadd.f32 %v254, %v276
    %v278 = vpop.f32.mrf.mxu0
    %v279 = vadd.f32 %v256, %v278
    %280 = vmatmul.bf16.gmra.mxu0 %v184
    %v281 = vpop.f32.mrf.mxu0
    %v282 = vadd.f32 %v259, %v281
    %v283 = vpop.f32.mrf.mxu0
    %284 = vdwg.mxu0
    %v285 = vmax.f32 %v226, 0.0
    %v286 = vmax.f32 %v272, 0.0
    %v287 = vmax.f32 %v228, 0.0
    %v288 = vmax.f32 %v274, 0.0
    %v289 = vmax.f32 %v231, 0.0
    %v290 = vmax.f32 %v277, 0.0
    %v291 = vmax.f32 %v233, 0.0
    %v292 = vmax.f32 %v279, 0.0
    %v293 = vmax.f32 %v236, 0.0
    %v294 = vmax.f32 %v282, 0.0
    %v295 = vpack.c.bf16 %v287, %v285
    %v296 = vpack.c.bf16 %v288, %v286
    %v297 = vpack.c.bf16 %v291, %v289
    %v298 = vpack.c.bf16 %v292, %v290
    %v299 = vpack.c.bf16 %v293, %v293
    %v300 = vpack.c.bf16 %v294, %v294
    %v301 = vld [vmem:[%s3] sm:$0xf]
    %v302 = vld [vmem:[%s3 + $0x4] sm:$0xf]
    %v303 = vld [vmem:[%s3 + $0x8] sm:$0xf]
    %v304 = vld [vmem:[%s3 + $0xc] sm:$0xf]
    %v305 = vld [vmem:[%s3 + $0x10] sm:$0xf]
    %v306 = vld [vmem:[%s3 + $0x14] sm:$0xf]
    %v307 = vld [vmem:[%s3 + $0x18] sm:$0xf]
    %v308 = vld [vmem:[%s3 + $0x1c] sm:$0xf]
    %v309 = vld [vmem:[%s3 + $0x20] sm:$0xf]
    %v310 = vld [vmem:[%s3 + $0x24] sm:$0xf]
    %v311 = vld [vmem:[%s3 + $0x28] sm:$0xf]
    %v312 = vld [vmem:[%s3 + $0x2c] sm:$0xf]
    %v313 = vld [vmem:[%s3 + $0x30] sm:$0xf]
    %v314 = vld [vmem:[%s3 + $0x34] sm:$0xf]
    %v315 = vld [vmem:[%s3 + $0x38] sm:$0xf]
    %v316 = vld [vmem:[%s3 + $0x3c] sm:$0xf]
    %v317 = vld [vmem:[%s3 + $0x40] sm:$0xf]
    %v318 = vld [vmem:[%s3 + $0x44] sm:$0xf]
    %v319 = vld [vmem:[%s3 + $0x48] sm:$0xf]
    %v320 = vld [vmem:[%s3 + $0x4c] sm:$0xf]
    %v321 = vld [vmem:[%s3 + $0x50] sm:$0xf]
    %v322 = vld [vmem:[%s3 + $0x54] sm:$0xf]
    %v323 = vld [vmem:[%s3 + $0x58] sm:$0xf]
    %v324 = vld [vmem:[%s3 + $0x5c] sm:$0xf]
    %v325 = vld [vmem:[%s3 + $0x60] sm:$0xf]
    %v326 = vld [vmem:[%s3 + $0x64] sm:$0xf]
    %v327 = vld [vmem:[%s3 + $0x68] sm:$0xf]
    %v328 = vld [vmem:[%s3 + $0x6c] sm:$0xf]
    %v329 = vld [vmem:[%s3 + $0x70] sm:$0xf]
    %v330 = vld [vmem:[%s3 + $0x74] sm:$0xf]
    %v331 = vld [vmem:[%s3 + $0x78] sm:$0xf]
    %v332 = vld [vmem:[%s3 + $0x7c] sm:$0xf]
    %v333 = vld [vmem:[%s4] sm:$0x1]
    %v335 = vperm.slane %v333, 0
    %v369 = vunpack.c.l.b16 %v301
    %v370 = vunpack.c.l.b16 %v302
    %v371 = vunpack.c.l.b16 %v303
    %v372 = vunpack.c.l.b16 %v304
    %v373 = vunpack.c.l.b16 %v305
    %v374 = vunpack.c.l.b16 %v306
    %v375 = vunpack.c.l.b16 %v307
    %v376 = vunpack.c.l.b16 %v308
    %v377 = vunpack.c.l.b16 %v309
    %v378 = vunpack.c.l.b16 %v310
    %v379 = vunpack.c.l.b16 %v311
    %v380 = vunpack.c.l.b16 %v312
    %v381 = vunpack.c.l.b16 %v313
    %v382 = vunpack.c.l.b16 %v314
    %v383 = vunpack.c.l.b16 %v315
    %v384 = vunpack.c.l.b16 %v316
    %v385 = vunpack.c.l.b16 %v317
    %v386 = vunpack.c.l.b16 %v318
    %v387 = vunpack.c.l.b16 %v319
    %v388 = vunpack.c.l.b16 %v320
    %v389 = vunpack.c.l.b16 %v321
    %v390 = vunpack.c.l.b16 %v322
    %v391 = vunpack.c.l.b16 %v323
    %v392 = vunpack.c.l.b16 %v324
    %v393 = vunpack.c.l.b16 %v325
    %v394 = vunpack.c.l.b16 %v326
    %v395 = vunpack.c.l.b16 %v327
    %v396 = vunpack.c.l.b16 %v328
    %v397 = vunpack.c.l.b16 %v329
    %v398 = vunpack.c.l.b16 %v330
    %v399 = vunpack.c.l.b16 %v331
    %v400 = vunpack.c.l.b16 %v332
    %v401 = vpack.c.b16 %v370, %v369
    %v402 = vpack.c.b16 %v372, %v371
    %v403 = vpack.c.b16 %v374, %v373
    %v404 = vpack.c.b16 %v376, %v375
    %v405 = vpack.c.b16 %v378, %v377
    %v406 = vpack.c.b16 %v380, %v379
    %v407 = vpack.c.b16 %v382, %v381
    %v408 = vpack.c.b16 %v384, %v383
    %v409 = vpack.c.b16 %v386, %v385
    %v410 = vpack.c.b16 %v388, %v387
    %v411 = vpack.c.b16 %v390, %v389
    %v412 = vpack.c.b16 %v392, %v391
    %v413 = vpack.c.b16 %v394, %v393
    %v414 = vpack.c.b16 %v396, %v395
    %v415 = vpack.c.b16 %v398, %v397
    %v416 = vpack.c.b16 %v400, %v399
    %433 = vmatpush.bf16.msra.mxu0 %v408
    %434 = vmatpush.bf16.msra.mxu0 %v407
    %435 = vmatpush.bf16.msra.mxu0 %v406
    %436 = vmatpush.bf16.msra.mxu0 %v405
    %437 = vmatpush.bf16.msra.mxu0 %v404
    %438 = vmatpush.bf16.msra.mxu0 %v403
    %439 = vmatpush.bf16.msra.mxu0 %v402
    %440 = vmatpush.bf16.msra.mxu0 %v401
    %441 = vmatmul.bf16.gmra.mxu0 %v295
    %v442 = vpop.f32.mrf.mxu0
    %v443 = vadd.f32 %v335, %v442
    %v444 = vpop.f32.mrf.mxu0
    %v445 = vadd.f32 %v335, %v444
    %446 = vmatmul.bf16.gmra.mxu0 %v297
    %v447 = vpop.f32.mrf.mxu0
    %v448 = vadd.f32 %v335, %v447
    %v449 = vpop.f32.mrf.mxu0
    %v450 = vadd.f32 %v335, %v449
    %451 = vmatmul.bf16.gmra.mxu0 %v299
    %v452 = vpop.f32.mrf.mxu0
    %v453 = vadd.f32 %v335, %v452
    %v454 = vpop.f32.mrf.mxu0
    %455 = vdwg.mxu0
    %456 = vmatpush.bf16.msra.mxu0 %v416
    %457 = vmatpush.bf16.msra.mxu0 %v415
    %458 = vmatpush.bf16.msra.mxu0 %v414
    %459 = vmatpush.bf16.msra.mxu0 %v413
    %460 = vmatpush.bf16.msra.mxu0 %v412
    %461 = vmatpush.bf16.msra.mxu0 %v411
    %462 = vmatpush.bf16.msra.mxu0 %v410
    %463 = vmatpush.bf16.msra.mxu0 %v409
    %464 = vmatmul.bf16.gmra.mxu0 %v296
    %v465 = vpop.f32.mrf.mxu0
    %v466 = vadd.f32 %v443, %v465
    %v467 = vpop.f32.mrf.mxu0
    %v468 = vadd.f32 %v445, %v467
    %469 = vmatmul.bf16.gmra.mxu0 %v298
    %v470 = vpop.f32.mrf.mxu0
    %v471 = vadd.f32 %v448, %v470
    %v472 = vpop.f32.mrf.mxu0
    %v473 = vadd.f32 %v450, %v472
    %474 = vmatmul.bf16.gmra.mxu0 %v300
    %v475 = vpop.f32.mrf.mxu0
    %v476 = vadd.f32 %v453, %v475
    %v477 = vpop.f32.mrf.mxu0
    %478 = vdwg.mxu0
    %v479 = vmax.f32 %v466, 0.0
    %v480 = vmax.f32 %v468, 0.0
    %v481 = vmax.f32 %v471, 0.0
    %v482 = vmax.f32 %v473, 0.0
    %v483 = vmax.f32 %v476, 0.0
    %v484 = vpack.c.bf16 %v480, %v479
    %v485 = vpack.c.bf16 %v482, %v481
    %v486 = vpack.c.bf16 %v483, %v483
    %v487 = vld [vmem:[%s5] sm:$0xf]
    %v488 = vld [vmem:[%s5 + $0x4] sm:$0xf]
    %v489 = vld [vmem:[%s5 + $0x8] sm:$0xf]
    %v490 = vld [vmem:[%s5 + $0xc] sm:$0xf]
    %v491 = vld [vmem:[%s5 + $0x10] sm:$0xf]
    %v492 = vld [vmem:[%s5 + $0x14] sm:$0xf]
    %v493 = vld [vmem:[%s5 + $0x18] sm:$0xf]
    %v494 = vld [vmem:[%s5 + $0x1c] sm:$0xf]
    %v495 = vld [vmem:[%s5 + $0x20] sm:$0xf]
    %v496 = vld [vmem:[%s5 + $0x24] sm:$0xf]
    %v497 = vld [vmem:[%s5 + $0x28] sm:$0xf]
    %v498 = vld [vmem:[%s5 + $0x2c] sm:$0xf]
    %v499 = vld [vmem:[%s5 + $0x30] sm:$0xf]
    %v500 = vld [vmem:[%s5 + $0x34] sm:$0xf]
    %v501 = vld [vmem:[%s5 + $0x38] sm:$0xf]
    %v502 = vld [vmem:[%s5 + $0x3c] sm:$0xf]
    %v503 = vld [vmem:[%s6] sm:$0x1]
    %v505 = vperm.slane %v503, 0
    %v523 = vunpack.c.l.b16 %v487
    %v524 = vunpack.c.l.b16 %v488
    %v525 = vunpack.c.l.b16 %v489
    %v526 = vunpack.c.l.b16 %v490
    %v527 = vunpack.c.l.b16 %v491
    %v528 = vunpack.c.l.b16 %v492
    %v529 = vunpack.c.l.b16 %v493
    %v530 = vunpack.c.l.b16 %v494
    %v531 = vunpack.c.l.b16 %v495
    %v532 = vunpack.c.l.b16 %v496
    %v533 = vunpack.c.l.b16 %v497
    %v534 = vunpack.c.l.b16 %v498
    %v535 = vunpack.c.l.b16 %v499
    %v536 = vunpack.c.l.b16 %v500
    %v537 = vunpack.c.l.b16 %v501
    %v538 = vunpack.c.l.b16 %v502
    %v539 = vpack.c.b16 %v524, %v523
    %v540 = vpack.c.b16 %v526, %v525
    %v541 = vpack.c.b16 %v528, %v527
    %v542 = vpack.c.b16 %v530, %v529
    %v543 = vpack.c.b16 %v532, %v531
    %v544 = vpack.c.b16 %v534, %v533
    %v545 = vpack.c.b16 %v536, %v535
    %v546 = vpack.c.b16 %v538, %v537
    %555 = vmatpush.bf16.msra.mxu0 %v546
    %556 = vmatpush.bf16.msra.mxu0 %v545
    %557 = vmatpush.bf16.msra.mxu0 %v544
    %558 = vmatpush.bf16.msra.mxu0 %v543
    %559 = vmatpush.bf16.msra.mxu0 %v542
    %560 = vmatpush.bf16.msra.mxu0 %v541
    %561 = vmatpush.bf16.msra.mxu0 %v540
    %562 = vmatpush.bf16.msra.mxu0 %v539
    %563 = vmatmul.bf16.gmra.mxu0 %v484
    %v564 = vpop.f32.mrf.mxu0
    %v565 = vadd.f32 %v505, %v564
    %v566 = vpop.f32.mrf.mxu0
    %v567 = vadd.f32 %v505, %v566
    %568 = vmatmul.bf16.gmra.mxu0 %v485
    %v569 = vpop.f32.mrf.mxu0
    %v570 = vadd.f32 %v505, %v569
    %v571 = vpop.f32.mrf.mxu0
    %v572 = vadd.f32 %v505, %v571
    %573 = vmatmul.bf16.gmra.mxu0 %v486
    %v574 = vpop.f32.mrf.mxu0
    %v575 = vadd.f32 %v505, %v574
    %v576 = vpop.f32.mrf.mxu0
    %577 = vdwg.mxu0
    %v578 = vmax.f32 %v565, 0.0
    %v579 = vmax.f32 %v567, 0.0
    %v580 = vmax.f32 %v570, 0.0
    %v581 = vmax.f32 %v572, 0.0
    %v582 = vmax.f32 %v575, 0.0
    %vm583 = vcmask 523264
    %584 = vst.msk [vmem:[#allocation2] sm:$0xff] %vm583, %v578
    %585 = vst.msk [vmem:[#allocation2 + $0x8] sm:$0xff] %vm583, %v579
    %586 = vst.msk [vmem:[#allocation2 + $0x10] sm:$0xff] %vm583, %v580
    %587 = vst.msk [vmem:[#allocation2 + $0x18] sm:$0xff] %vm583, %v581
    %588 = vst.msk [vmem:[#allocation2 + $0x20] sm:$0xff] %vm583, %v582
    // Predicated region
    $region30: #{encoder_classic1.1} parent=1 // pred_check
      _
    $region31: #{encoder_classic1.1} parent=1 // pred_check_branch
      %590 = sbr.rel (0) target = $region33
    $region32: #{encoder_classic1.1} parent=1 // pred_region
      %592 = vsyncadd [#allocation3], 0
      %s593 = sshll.u32 [#allocation2], 4
      %s594 = int_to_ptr.vmem [resolvable:$true] %s593
      %s595 = sshll.u32 %s7, 4
      %s596 = int_to_ptr.hbm [resolvable:$true] %s595
      %601 = dma.vmem_to_hbm [thread:$0]  %s594, 640, %s596, [#allocation3], 128, 128, 8
    $region33: #{encoder_classic1.1} parent=1 // pred_fallthru
      _
    // Predicated region
    $region34: #{encoder_classic1.1} parent=1 // pred_check
      _
    $region35: #{encoder_classic1.1} parent=1 // pred_check_branch
      %603 = sbr.rel (0) target = $region37
    $region36: #{encoder_classic1.1} parent=1 // pred_region
      %605 = dma.done [#allocation3], 640
    $region37: #{encoder_classic1.1} parent=1 // pred_fallthru
      _
    %606 = vsyncpa [#allocation3], 1

</llo_original>
